<compile_context>
chip_gen: v5e
topology: v5e:2x2
jax: 0.10.0
libtpu: 0.0.40
codegen_flags: <defaults>
</compile_context>

<pallas_src>
import functools
import math

import jax
import jax.numpy as jnp
import numpy as np
from jax.experimental import pallas as pl
from jax.experimental.pallas import tpu as pltpu


def _round_up(x, m):
    return ((x + m - 1) // m) * m


def _cdiv(a, b):
    return (a + b - 1) // b


def _pillar_kernel(x_ref, ctr_ref, w1c_ref, w1a_ref, b1_ref, w2_ref, b2_ref, out_ref,
                   *, n_points, mxu_dtype):
    # x_ref:   (N, 4, TP)  pre-centered point features [dx, dy, dz, intensity]
    # ctr_ref: (3, TP)     per-pillar centers (f32)
    # w1c_ref: (C, 4)      folded layer-1 weight^T acting on [dx, dy, dz, i]
    # w1a_ref: (C, 3)      folded layer-1 weight^T acting on the centers
    # b1/b2:   (C, 1)      BN-folded biases;  w2_ref: (C, C) layer-2 weight^T (mxu dtype)
    # out_ref: (C, TP)     pooled features (lane-dense output block)
    f32 = jnp.float32
    c, tp = out_ref.shape

    ctr = ctr_ref[...].astype(f32)
    w1c = w1c_ref[...].astype(f32)
    w1a = w1a_ref[...].astype(f32)
    w2 = w2_ref[...]                       # already in mxu_dtype (bf16 by default)

    # Hoisted per-block terms (broadcasts are NOT re-emitted inside the point loop).
    # Per-pillar absolute-position contribution + layer-1 bias: (C, TP).
    lin1_bias = jnp.dot(w1a, ctr, preferred_element_type=f32) + b1_ref[...].astype(f32)
    b2_full = jnp.broadcast_to(b2_ref[...].astype(f32), (c, tp))

    def body(n, pooled):
        x_n = x_ref[n].astype(f32)                                       # (4, TP)
        # Layer 1 (Linear + BN folded), f32 for coordinate precision.  LHS is (C, 4),
        # so MXU pushes are only C/8 per 256-lane RHS tile.
        h1 = jnp.dot(w1c, x_n, preferred_element_type=f32) + lin1_bias   # (C, TP)
        h1 = jnp.maximum(h1, 0.0)
        # Layer 2 (Linear + BN folded): bf16 MXU operands, f32 accumulation.
        h2 = jnp.dot(w2, h1.astype(mxu_dtype),
                     preferred_element_type=f32) + b2_full               # (C, TP)
        h2 = jnp.maximum(h2, 0.0)
        # Max-pool over points = running elementwise max (no cross-lane reduce).
        return jnp.maximum(pooled, h2)

    pooled0 = jnp.full((c, tp), -jnp.inf, f32)
    # N (points per pillar) is small (<= ~100); full unroll gives the scheduler
    # cross-point-slot overlap of the two dependent matmuls.
    pooled = jax.lax.fori_loop(0, n_points, body, pooled0, unroll=True)
    out_ref[...] = pooled


def pillar_feature_net(points, center_coords, params, channels, *,
                       pillars_per_block=1024,
                       points_storage_dtype=jnp.float32,
                       layer2_mxu_dtype=jnp.bfloat16):
    """points: [B, P, N, 4] f32, center_coords: [B, P, 3] f32 -> pooled [B, P, C] f32.

    points_storage_dtype: dtype for the HBM/VMEM points slab (bf16 is safe on
      v6e/v7x because points are pre-centered in the wrapper); centers/weights for
      layer 1 stay f32.  Compute is f32 except the layer-2 MXU operands.
    layer2_mxu_dtype: dtype fed to the layer-2 matmul (bf16 default; f32 for a
      strict-accuracy path).
    """
    B, P, N, D = points.shape
    C = channels
    assert D == 4, "expect xyz + intensity"

    total = B * P

    # ---- tile size: multiple of 128 lanes, >=4 grid steps when work allows ----
    total_128 = _round_up(total, 128)
    tp = min(_round_up(pillars_per_block, 128), total_128)
    tp_quarter = _round_up(max(1, _cdiv(total, 4)), 128)   # aim for >=4 grid steps (v7x)
    TP = max(128, min(tp, tp_quarter))
    total_padded = _round_up(total, TP)
    # VMEM per block (f32, TP=1024, N<=100): points 2 * N*8*TP*4 <= ~6.5 MiB,
    # out 2 * C*TP*4, centers/weights/intermediates ~1-2 MiB  ->  well under v5e's
    # 16 MiB default scoped VMEM; no vmem_limit_bytes override needed.

    # ---- fold eval-mode BatchNorm into the linear layers ----
    eps = 1e-5

    def fold(w, b, gamma, beta, rmean, rvar):
        s = gamma / jnp.sqrt(rvar + eps)          # [C]
        return w * s[None, :], (b - rmean) * s + beta

    w1f, b1f = fold(params["w1"], params["b1"], params["g1"], params["be1"],
                    params["rm1"], params["rv1"])
    w2f, b2f = fold(params["w2"], params["b2"], params["g2"], params["be2"],
                    params["rm2"], params["rv2"])

    # ---- fold the 7-wide [points ++ offset] construction into the weights ----
    # [x,y,z,i, x-cx,y-cy,z-cz] @ W1  ==  [dx,dy,dz,i] @ W1c  +  [cx,cy,cz] @ W1a
    # with dx = x-cx, W1c = [W1[:3]+W1[4:7]; W1[3]],  W1a = W1[:3].
    w1c = w1f[:4].at[:3].add(w1f[4:7])            # (4, C)
    w1cT = jnp.asarray(w1c.T, jnp.float32)        # (C, 4)
    w1aT = jnp.asarray(w1f[:3].T, jnp.float32)    # (C, 3)
    w2T = w2f.T.astype(layer2_mxu_dtype)          # (C, C), bf16 by default
    b1c = b1f.reshape(C, 1).astype(jnp.float32)
    b2c = b2f.reshape(C, 1).astype(jnp.float32)

    # ---- pre-center points, pad, and transpose to lane-dense layouts ----
    pts = points.reshape(total, N, 4).astype(jnp.float32)
    ctr = center_coords.reshape(total, 3).astype(jnp.float32)
    dxyz = pts[..., :3] - ctr[:, None, :]
    pts_c = jnp.concatenate([dxyz, pts[..., 3:]], axis=-1)          # (total, N, 4)

    pad = total_padded - total
    if pad:
        pts_c = jnp.concatenate(
            [pts_c, jnp.zeros((pad, N, 4), pts_c.dtype)], axis=0)
        ctr = jnp.concatenate(
            [ctr, jnp.zeros((pad, 3), ctr.dtype)], axis=0)

    pts_t = pts_c.transpose(1, 2, 0).astype(points_storage_dtype)   # (N, 4, total_padded)
    ctr_t = ctr.T                                                   # (3, total_padded) f32

    grid = (total_padded // TP,)
    kernel = functools.partial(_pillar_kernel, n_points=N,
                               mxu_dtype=jnp.dtype(layer2_mxu_dtype))

    pts_bytes = int(pts_t.size) * jnp.dtype(points_storage_dtype).itemsize
    w2_bytes = int(w2T.size) * jnp.dtype(layer2_mxu_dtype).itemsize
    other_bytes = (int(ctr_t.size) + int(w1cT.size) + int(w1aT.size)
                   + int(b1c.size) + int(b2c.size) + total_padded * C) * 4
    cost = pl.CostEstimate(
        flops=2 * total_padded * N * C * (4 + C) + 2 * total_padded * 3 * C,
        transcendentals=0,
        bytes_accessed=pts_bytes + w2_bytes + other_bytes,
    )

    pooled_t = pl.pallas_call(
        kernel,
        out_shape=jax.ShapeDtypeStruct((C, total_padded), jnp.float32),
        grid_spec=pltpu.PrefetchScalarGridSpec(
            num_scalar_prefetch=0,
            grid=grid,
            in_specs=[
                pl.BlockSpec((N, 4, TP), lambda i: (0, 0, i)),   # points (lane-dense)
                pl.BlockSpec((3, TP), lambda i: (0, i)),         # centers (lane-dense)
                pl.BlockSpec((C, 4), lambda i: (0, 0)),          # W1c^T
                pl.BlockSpec((C, 3), lambda i: (0, 0)),          # W1a^T
                pl.BlockSpec((C, 1), lambda i: (0, 0)),          # b1
                pl.BlockSpec((C, C), lambda i: (0, 0)),          # W2^T (bf16)
                pl.BlockSpec((C, 1), lambda i: (0, 0)),          # b2
            ],
            out_specs=pl.BlockSpec((C, TP), lambda i: (0, i)),   # lane-dense output
        ),
        compiler_params=pltpu.CompilerParams(
            dimension_semantics=("parallel",)),   # lets v7x's 2 TCs split the grid
        cost_estimate=cost,
    )(pts_t, ctr_t, w1cT, w1aT, b1c, w2T, b2c)

    return pooled_t[:, :total].T.reshape(B, P, C)


def make_params(key, channels):
    """Deterministic parameter init (PyTorch-style uniform for Linear; nontrivial BN stats)."""
    C = channels
    ks = jax.random.split(key, 12)
    lim1 = 1.0 / math.sqrt(7)
    lim2 = 1.0 / math.sqrt(C)
    return {
        # stored as (in, out) so the reference computes x @ W
        "w1": jax.random.uniform(ks[0], (7, C), jnp.float32, -lim1, lim1),
        "b1": jax.random.uniform(ks[1], (C,), jnp.float32, -lim1, lim1),
        "g1": jax.random.uniform(ks[2], (C,), jnp.float32, 0.5, 1.5),
        "be1": 0.1 * jax.random.normal(ks[3], (C,), jnp.float32),
        "rm1": 0.1 * jax.random.normal(ks[4], (C,), jnp.float32),
        "rv1": jax.random.uniform(ks[5], (C,), jnp.float32, 0.5, 1.5),
        "w2": jax.random.uniform(ks[6], (C, C), jnp.float32, -lim2, lim2),
        "b2": jax.random.uniform(ks[7], (C,), jnp.float32, -lim2, lim2),
        "g2": jax.random.uniform(ks[8], (C,), jnp.float32, 0.5, 1.5),
        "be2": 0.1 * jax.random.normal(ks[9], (C,), jnp.float32),
        "rm2": 0.1 * jax.random.normal(ks[10], (C,), jnp.float32),
        "rv2": jax.random.uniform(ks[11], (C,), jnp.float32, 0.5, 1.5),
    }


def reference_forward(points, center_coords, params, channels):
    """Pure-JAX reference matching the PyTorch forward (eval-mode BN)."""
    B, P, N, _ = points.shape
    eps = 1e-5
    centers = center_coords[:, :, None, :]
    offset = points[..., :3] - centers
    x = jnp.concatenate([points, offset], axis=-1).reshape(-1, 7)

    def bn(x, g, b, rm, rv):
        return (x - rm) / jnp.sqrt(rv + eps) * g + b

    h = x @ params["w1"] + params["b1"]
    h = jax.nn.relu(bn(h, params["g1"], params["be1"], params["rm1"], params["rv1"]))
    h = h @ params["w2"] + params["b2"]
    h = jax.nn.relu(bn(h, params["g2"], params["be2"], params["rm2"], params["rv2"]))
    h = h.reshape(B, P, N, channels)
    return jnp.max(h, axis=2)


if __name__ == "__main__":
    B, P, N, C = 2, 16, 8, 32   # batch, pillars, max points per pillar, channels

    key = jax.random.PRNGKey(0)
    kp, kc, kw = jax.random.split(key, 3)
    points = jax.random.normal(kp, (B, P, N, 4), jnp.float32)
    center_coords = jax.random.normal(kc, (B, P, 3), jnp.float32)
    params = make_params(kw, C)

    ref = jax.block_until_ready(reference_forward(points, center_coords, params, C))

    # Strict structural check: f32 MXU operands end-to-end.
    out_f32 = jax.block_until_ready(
        pillar_feature_net(points, center_coords, params, C,
                           layer2_mxu_dtype=jnp.float32))
    assert out_f32.shape == (B, P, C)
    np.testing.assert_allclose(np.asarray(out_f32), np.asarray(ref),
                               rtol=1e-4, atol=1e-4)

    # Default (performance) path: bf16 operands for the layer-2 matmul.
    out = jax.block_until_ready(pillar_feature_net(points, center_coords, params, C))
    assert out.shape == (B, P, C)
    np.testing.assert_allclose(np.asarray(out), np.asarray(ref),
                               rtol=2e-2, atol=2e-2)

    print("KERNEL_OK")
</pallas_src>

<mosaic_0001>
module attributes {stable_mosaic.version = 11 : i64} {
  func.func @_pillar_kernel(%arg0: i32, %arg1: memref<8x4x128xf32, #tpu.memory_space<vmem>>, %arg2: memref<3x128xf32, #tpu.memory_space<vmem>>, %arg3: memref<32x4xf32, #tpu.memory_space<vmem>>, %arg4: memref<32x3xf32, #tpu.memory_space<vmem>>, %arg5: memref<32x1xf32, #tpu.memory_space<vmem>>, %arg6: memref<32x32xf32, #tpu.memory_space<vmem>>, %arg7: memref<32x1xf32, #tpu.memory_space<vmem>>, %arg8: memref<32x128xf32, #tpu.memory_space<vmem>>) attributes {dimension_semantics = [#tpu.dimension_semantics<parallel>], iteration_bounds = array<i64: 1>, scalar_prefetch = 0 : i64, scratch_operands = 0 : i64, tpu.core_type = #tpu.core_type<tc>, window_params = [{transform_indices = @transform_0, window_bounds = array<i64: 8, 4, 128>}, {transform_indices = @transform_1, window_bounds = array<i64: 3, 128>}, {pipeline_mode = #tpu.pipeline_mode<synchronous>, transform_indices = @transform_2, window_bounds = array<i64: 32, 4>}, {pipeline_mode = #tpu.pipeline_mode<synchronous>, transform_indices = @transform_3, window_bounds = array<i64: 32, 3>}, {pipeline_mode = #tpu.pipeline_mode<synchronous>, transform_indices = @transform_4, window_bounds = array<i64: 32, 1>}, {pipeline_mode = #tpu.pipeline_mode<synchronous>, transform_indices = @transform_5, window_bounds = array<i64: 32, 32>}, {pipeline_mode = #tpu.pipeline_mode<synchronous>, transform_indices = @transform_6, window_bounds = array<i64: 32, 1>}, {transform_indices = @transform_7, window_bounds = array<i64: 32, 128>}]} {
    %c0 = arith.constant 0 : index
    %c0_0 = arith.constant 0 : index
    %0 = vector.load %arg2[%c0, %c0_0] : memref<3x128xf32, #tpu.memory_space<vmem>>, vector<3x128xf32>
    %c0_1 = arith.constant 0 : index
    %c0_2 = arith.constant 0 : index
    %1 = vector.load %arg3[%c0_1, %c0_2] : memref<32x4xf32, #tpu.memory_space<vmem>>, vector<32x4xf32>
    %c0_3 = arith.constant 0 : index
    %c0_4 = arith.constant 0 : index
    %2 = vector.load %arg4[%c0_3, %c0_4] : memref<32x3xf32, #tpu.memory_space<vmem>>, vector<32x3xf32>
    %c0_5 = arith.constant 0 : index
    %c0_6 = arith.constant 0 : index
    %3 = vector.load %arg6[%c0_5, %c0_6] : memref<32x32xf32, #tpu.memory_space<vmem>>, vector<32x32xf32>
    %cst = arith.constant dense<0.000000e+00> : vector<32x128xf32>
    %4 = tpu.matmul %2, %0, %cst {dimension_numbers = #tpu.dot_dimension_numbers<[1], [0], [0], [1], [0, 0, 1, 1], [], []>} : vector<32x3xf32>, vector<3x128xf32>, vector<32x128xf32> -> vector<32x128xf32>
    %c0_7 = arith.constant 0 : index
    %c0_8 = arith.constant 0 : index
    %5 = vector.load %arg5[%c0_7, %c0_8] : memref<32x1xf32, #tpu.memory_space<vmem>>, vector<32x1xf32>
    %6 = vector.broadcast %5 : vector<32x1xf32> to vector<32x128xf32>
    %7 = arith.addf %4, %6 : vector<32x128xf32>
    %c0_9 = arith.constant 0 : index
    %c0_10 = arith.constant 0 : index
    %8 = vector.load %arg7[%c0_9, %c0_10] : memref<32x1xf32, #tpu.memory_space<vmem>>, vector<32x1xf32>
    %9 = vector.shape_cast %8 : vector<32x1xf32> to vector<32x1xf32>
    %10 = vector.broadcast %9 : vector<32x1xf32> to vector<32x128xf32>
    %cst_11 = arith.constant 0xFF800000 : f32
    %11 = vector.broadcast %cst_11 : f32 to vector<32x128xf32>
    %c0_i32 = arith.constant 0 : i32
    %12 = arith.index_cast %c0_i32 : i32 to index
    %c0_12 = arith.constant 0 : index
    %c0_13 = arith.constant 0 : index
    %13 = vector.load %arg1[%12, %c0_12, %c0_13] : memref<8x4x128xf32, #tpu.memory_space<vmem>>, vector<1x4x128xf32>
    %14 = vector.shape_cast %13 : vector<1x4x128xf32> to vector<4x128xf32>
    %cst_14 = arith.constant dense<0.000000e+00> : vector<32x128xf32>
    %15 = tpu.matmul %1, %14, %cst_14 {dimension_numbers = #tpu.dot_dimension_numbers<[1], [0], [0], [1], [0, 0, 1, 1], [], []>} : vector<32x4xf32>, vector<4x128xf32>, vector<32x128xf32> -> vector<32x128xf32>
    %16 = arith.addf %15, %7 : vector<32x128xf32>
    %cst_15 = arith.constant 0.000000e+00 : f32
    %17 = vector.broadcast %cst_15 : f32 to vector<32x128xf32>
    %18 = arith.maximumf %16, %17 : vector<32x128xf32>
    %cst_16 = arith.constant dense<0.000000e+00> : vector<32x128xf32>
    %19 = tpu.matmul %3, %18, %cst_16 {dimension_numbers = #tpu.dot_dimension_numbers<[1], [0], [0], [1], [0, 0, 1, 1], [], []>} : vector<32x32xf32>, vector<32x128xf32>, vector<32x128xf32> -> vector<32x128xf32>
    %20 = arith.addf %19, %10 : vector<32x128xf32>
    %cst_17 = arith.constant 0.000000e+00 : f32
    %21 = vector.broadcast %cst_17 : f32 to vector<32x128xf32>
    %22 = arith.maximumf %20, %21 : vector<32x128xf32>
    %23 = arith.maximumf %11, %22 : vector<32x128xf32>
    %c1_i32 = arith.constant 1 : i32
    %24 = arith.index_cast %c1_i32 : i32 to index
    %c0_18 = arith.constant 0 : index
    %c0_19 = arith.constant 0 : index
    %25 = vector.load %arg1[%24, %c0_18, %c0_19] : memref<8x4x128xf32, #tpu.memory_space<vmem>>, vector<1x4x128xf32>
    %26 = vector.shape_cast %25 : vector<1x4x128xf32> to vector<4x128xf32>
    %cst_20 = arith.constant dense<0.000000e+00> : vector<32x128xf32>
    %27 = tpu.matmul %1, %26, %cst_20 {dimension_numbers = #tpu.dot_dimension_numbers<[1], [0], [0], [1], [0, 0, 1, 1], [], []>} : vector<32x4xf32>, vector<4x128xf32>, vector<32x128xf32> -> vector<32x128xf32>
    %28 = arith.addf %27, %7 : vector<32x128xf32>
    %cst_21 = arith.constant 0.000000e+00 : f32
    %29 = vector.broadcast %cst_21 : f32 to vector<32x128xf32>
    %30 = arith.maximumf %28, %29 : vector<32x128xf32>
    %cst_22 = arith.constant dense<0.000000e+00> : vector<32x128xf32>
    %31 = tpu.matmul %3, %30, %cst_22 {dimension_numbers = #tpu.dot_dimension_numbers<[1], [0], [0], [1], [0, 0, 1, 1], [], []>} : vector<32x32xf32>, vector<32x128xf32>, vector<32x128xf32> -> vector<32x128xf32>
    %32 = arith.addf %31, %10 : vector<32x128xf32>
    %cst_23 = arith.constant 0.000000e+00 : f32
    %33 = vector.broadcast %cst_23 : f32 to vector<32x128xf32>
    %34 = arith.maximumf %32, %33 : vector<32x128xf32>
    %35 = arith.maximumf %23, %34 : vector<32x128xf32>
    %c2_i32 = arith.constant 2 : i32
    %36 = arith.index_cast %c2_i32 : i32 to index
    %c0_24 = arith.constant 0 : index
    %c0_25 = arith.constant 0 : index
    %37 = vector.load %arg1[%36, %c0_24, %c0_25] : memref<8x4x128xf32, #tpu.memory_space<vmem>>, vector<1x4x128xf32>
    %38 = vector.shape_cast %37 : vector<1x4x128xf32> to vector<4x128xf32>
    %cst_26 = arith.constant dense<0.000000e+00> : vector<32x128xf32>
    %39 = tpu.matmul %1, %38, %cst_26 {dimension_numbers = #tpu.dot_dimension_numbers<[1], [0], [0], [1], [0, 0, 1, 1], [], []>} : vector<32x4xf32>, vector<4x128xf32>, vector<32x128xf32> -> vector<32x128xf32>
    %40 = arith.addf %39, %7 : vector<32x128xf32>
    %cst_27 = arith.constant 0.000000e+00 : f32
    %41 = vector.broadcast %cst_27 : f32 to vector<32x128xf32>
    %42 = arith.maximumf %40, %41 : vector<32x128xf32>
    %cst_28 = arith.constant dense<0.000000e+00> : vector<32x128xf32>
    %43 = tpu.matmul %3, %42, %cst_28 {dimension_numbers = #tpu.dot_dimension_numbers<[1], [0], [0], [1], [0, 0, 1, 1], [], []>} : vector<32x32xf32>, vector<32x128xf32>, vector<32x128xf32> -> vector<32x128xf32>
    %44 = arith.addf %43, %10 : vector<32x128xf32>
    %cst_29 = arith.constant 0.000000e+00 : f32
    %45 = vector.broadcast %cst_29 : f32 to vector<32x128xf32>
    %46 = arith.maximumf %44, %45 : vector<32x128xf32>
    %47 = arith.maximumf %35, %46 : vector<32x128xf32>
    %c3_i32 = arith.constant 3 : i32
    %48 = arith.index_cast %c3_i32 : i32 to index
    %c0_30 = arith.constant 0 : index
    %c0_31 = arith.constant 0 : index
    %49 = vector.load %arg1[%48, %c0_30, %c0_31] : memref<8x4x128xf32, #tpu.memory_space<vmem>>, vector<1x4x128xf32>
    %50 = vector.shape_cast %49 : vector<1x4x128xf32> to vector<4x128xf32>
    %cst_32 = arith.constant dense<0.000000e+00> : vector<32x128xf32>
    %51 = tpu.matmul %1, %50, %cst_32 {dimension_numbers = #tpu.dot_dimension_numbers<[1], [0], [0], [1], [0, 0, 1, 1], [], []>} : vector<32x4xf32>, vector<4x128xf32>, vector<32x128xf32> -> vector<32x128xf32>
    %52 = arith.addf %51, %7 : vector<32x128xf32>
    %cst_33 = arith.constant 0.000000e+00 : f32
    %53 = vector.broadcast %cst_33 : f32 to vector<32x128xf32>
    %54 = arith.maximumf %52, %53 : vector<32x128xf32>
    %cst_34 = arith.constant dense<0.000000e+00> : vector<32x128xf32>
    %55 = tpu.matmul %3, %54, %cst_34 {dimension_numbers = #tpu.dot_dimension_numbers<[1], [0], [0], [1], [0, 0, 1, 1], [], []>} : vector<32x32xf32>, vector<32x128xf32>, vector<32x128xf32> -> vector<32x128xf32>
    %56 = arith.addf %55, %10 : vector<32x128xf32>
    %cst_35 = arith.constant 0.000000e+00 : f32
    %57 = vector.broadcast %cst_35 : f32 to vector<32x128xf32>
    %58 = arith.maximumf %56, %57 : vector<32x128xf32>
    %59 = arith.maximumf %47, %58 : vector<32x128xf32>
    %c4_i32 = arith.constant 4 : i32
    %60 = arith.index_cast %c4_i32 : i32 to index
    %c0_36 = arith.constant 0 : index
    %c0_37 = arith.constant 0 : index
    %61 = vector.load %arg1[%60, %c0_36, %c0_37] : memref<8x4x128xf32, #tpu.memory_space<vmem>>, vector<1x4x128xf32>
    %62 = vector.shape_cast %61 : vector<1x4x128xf32> to vector<4x128xf32>
    %cst_38 = arith.constant dense<0.000000e+00> : vector<32x128xf32>
    %63 = tpu.matmul %1, %62, %cst_38 {dimension_numbers = #tpu.dot_dimension_numbers<[1], [0], [0], [1], [0, 0, 1, 1], [], []>} : vector<32x4xf32>, vector<4x128xf32>, vector<32x128xf32> -> vector<32x128xf32>
    %64 = arith.addf %63, %7 : vector<32x128xf32>
    %cst_39 = arith.constant 0.000000e+00 : f32
    %65 = vector.broadcast %cst_39 : f32 to vector<32x128xf32>
    %66 = arith.maximumf %64, %65 : vector<32x128xf32>
    %cst_40 = arith.constant dense<0.000000e+00> : vector<32x128xf32>
    %67 = tpu.matmul %3, %66, %cst_40 {dimension_numbers = #tpu.dot_dimension_numbers<[1], [0], [0], [1], [0, 0, 1, 1], [], []>} : vector<32x32xf32>, vector<32x128xf32>, vector<32x128xf32> -> vector<32x128xf32>
    %68 = arith.addf %67, %10 : vector<32x128xf32>
    %cst_41 = arith.constant 0.000000e+00 : f32
    %69 = vector.broadcast %cst_41 : f32 to vector<32x128xf32>
    %70 = arith.maximumf %68, %69 : vector<32x128xf32>
    %71 = arith.maximumf %59, %70 : vector<32x128xf32>
    %c5_i32 = arith.constant 5 : i32
    %72 = arith.index_cast %c5_i32 : i32 to index
    %c0_42 = arith.constant 0 : index
    %c0_43 = arith.constant 0 : index
    %73 = vector.load %arg1[%72, %c0_42, %c0_43] : memref<8x4x128xf32, #tpu.memory_space<vmem>>, vector<1x4x128xf32>
    %74 = vector.shape_cast %73 : vector<1x4x128xf32> to vector<4x128xf32>
    %cst_44 = arith.constant dense<0.000000e+00> : vector<32x128xf32>
    %75 = tpu.matmul %1, %74, %cst_44 {dimension_numbers = #tpu.dot_dimension_numbers<[1], [0], [0], [1], [0, 0, 1, 1], [], []>} : vector<32x4xf32>, vector<4x128xf32>, vector<32x128xf32> -> vector<32x128xf32>
    %76 = arith.addf %75, %7 : vector<32x128xf32>
    %cst_45 = arith.constant 0.000000e+00 : f32
    %77 = vector.broadcast %cst_45 : f32 to vector<32x128xf32>
    %78 = arith.maximumf %76, %77 : vector<32x128xf32>
    %cst_46 = arith.constant dense<0.000000e+00> : vector<32x128xf32>
    %79 = tpu.matmul %3, %78, %cst_46 {dimension_numbers = #tpu.dot_dimension_numbers<[1], [0], [0], [1], [0, 0, 1, 1], [], []>} : vector<32x32xf32>, vector<32x128xf32>, vector<32x128xf32> -> vector<32x128xf32>
    %80 = arith.addf %79, %10 : vector<32x128xf32>
    %cst_47 = arith.constant 0.000000e+00 : f32
    %81 = vector.broadcast %cst_47 : f32 to vector<32x128xf32>
    %82 = arith.maximumf %80, %81 : vector<32x128xf32>
    %83 = arith.maximumf %71, %82 : vector<32x128xf32>
    %c6_i32 = arith.constant 6 : i32
    %84 = arith.index_cast %c6_i32 : i32 to index
    %c0_48 = arith.constant 0 : index
    %c0_49 = arith.constant 0 : index
    %85 = vector.load %arg1[%84, %c0_48, %c0_49] : memref<8x4x128xf32, #tpu.memory_space<vmem>>, vector<1x4x128xf32>
    %86 = vector.shape_cast %85 : vector<1x4x128xf32> to vector<4x128xf32>
    %cst_50 = arith.constant dense<0.000000e+00> : vector<32x128xf32>
    %87 = tpu.matmul %1, %86, %cst_50 {dimension_numbers = #tpu.dot_dimension_numbers<[1], [0], [0], [1], [0, 0, 1, 1], [], []>} : vector<32x4xf32>, vector<4x128xf32>, vector<32x128xf32> -> vector<32x128xf32>
    %88 = arith.addf %87, %7 : vector<32x128xf32>
    %cst_51 = arith.constant 0.000000e+00 : f32
    %89 = vector.broadcast %cst_51 : f32 to vector<32x128xf32>
    %90 = arith.maximumf %88, %89 : vector<32x128xf32>
    %cst_52 = arith.constant dense<0.000000e+00> : vector<32x128xf32>
    %91 = tpu.matmul %3, %90, %cst_52 {dimension_numbers = #tpu.dot_dimension_numbers<[1], [0], [0], [1], [0, 0, 1, 1], [], []>} : vector<32x32xf32>, vector<32x128xf32>, vector<32x128xf32> -> vector<32x128xf32>
    %92 = arith.addf %91, %10 : vector<32x128xf32>
    %cst_53 = arith.constant 0.000000e+00 : f32
    %93 = vector.broadcast %cst_53 : f32 to vector<32x128xf32>
    %94 = arith.maximumf %92, %93 : vector<32x128xf32>
    %95 = arith.maximumf %83, %94 : vector<32x128xf32>
    %c7_i32 = arith.constant 7 : i32
    %96 = arith.index_cast %c7_i32 : i32 to index
    %c0_54 = arith.constant 0 : index
    %c0_55 = arith.constant 0 : index
    %97 = vector.load %arg1[%96, %c0_54, %c0_55] : memref<8x4x128xf32, #tpu.memory_space<vmem>>, vector<1x4x128xf32>
    %98 = vector.shape_cast %97 : vector<1x4x128xf32> to vector<4x128xf32>
    %cst_56 = arith.constant dense<0.000000e+00> : vector<32x128xf32>
    %99 = tpu.matmul %1, %98, %cst_56 {dimension_numbers = #tpu.dot_dimension_numbers<[1], [0], [0], [1], [0, 0, 1, 1], [], []>} : vector<32x4xf32>, vector<4x128xf32>, vector<32x128xf32> -> vector<32x128xf32>
    %100 = arith.addf %99, %7 : vector<32x128xf32>
    %cst_57 = arith.constant 0.000000e+00 : f32
    %101 = vector.broadcast %cst_57 : f32 to vector<32x128xf32>
    %102 = arith.maximumf %100, %101 : vector<32x128xf32>
    %cst_58 = arith.constant dense<0.000000e+00> : vector<32x128xf32>
    %103 = tpu.matmul %3, %102, %cst_58 {dimension_numbers = #tpu.dot_dimension_numbers<[1], [0], [0], [1], [0, 0, 1, 1], [], []>} : vector<32x32xf32>, vector<32x128xf32>, vector<32x128xf32> -> vector<32x128xf32>
    %104 = arith.addf %103, %10 : vector<32x128xf32>
    %cst_59 = arith.constant 0.000000e+00 : f32
    %105 = vector.broadcast %cst_59 : f32 to vector<32x128xf32>
    %106 = arith.maximumf %104, %105 : vector<32x128xf32>
    %107 = arith.maximumf %95, %106 : vector<32x128xf32>
    %c8_i32 = arith.constant 8 : i32
    %c0_60 = arith.constant 0 : index
    %c0_61 = arith.constant 0 : index
    %108 = vector.load %arg8[%c0_60, %c0_61] : memref<32x128xf32, #tpu.memory_space<vmem>>, vector<32x128xf32>
    tpu.vector_store %arg8[%c0_60, %c0_61], %107 {strides = array<i32>} : memref<32x128xf32, #tpu.memory_space<vmem>>, vector<32x128xf32>,
    return
  }
  func.func @transform_0(%arg0: i32) -> (i32, i32, i32) {
    %c0_i32 = arith.constant 0 : i32
    %c0_i32_0 = arith.constant 0 : i32
    %c0_i32_1 = arith.constant 0 : i32
    return %c0_i32, %c0_i32_0, %arg0 : i32, i32, i32
  }
  func.func @transform_1(%arg0: i32) -> (i32, i32) {
    %c0_i32 = arith.constant 0 : i32
    %c0_i32_0 = arith.constant 0 : i32
    return %c0_i32, %arg0 : i32, i32
  }
  func.func @transform_2(%arg0: i32) -> (i32, i32) {
    %c0_i32 = arith.constant 0 : i32
    %c0_i32_0 = arith.constant 0 : i32
    %c0_i32_1 = arith.constant 0 : i32
    return %c0_i32, %c0_i32_0 : i32, i32
  }
  func.func @transform_3(%arg0: i32) -> (i32, i32) {
    %c0_i32 = arith.constant 0 : i32
    %c0_i32_0 = arith.constant 0 : i32
    %c0_i32_1 = arith.constant 0 : i32
    return %c0_i32, %c0_i32_0 : i32, i32
  }
  func.func @transform_4(%arg0: i32) -> (i32, i32) {
    %c0_i32 = arith.constant 0 : i32
    %c0_i32_0 = arith.constant 0 : i32
    %c0_i32_1 = arith.constant 0 : i32
    return %c0_i32, %c0_i32_0 : i32, i32
  }
  func.func @transform_5(%arg0: i32) -> (i32, i32) {
    %c0_i32 = arith.constant 0 : i32
    %c0_i32_0 = arith.constant 0 : i32
    %c0_i32_1 = arith.constant 0 : i32
    return %c0_i32, %c0_i32_0 : i32, i32
  }
  func.func @transform_6(%arg0: i32) -> (i32, i32) {
    %c0_i32 = arith.constant 0 : i32
    %c0_i32_0 = arith.constant 0 : i32
    %c0_i32_1 = arith.constant 0 : i32
    return %c0_i32, %c0_i32_0 : i32, i32
  }
  func.func @transform_7(%arg0: i32) -> (i32, i32) {
    %c0_i32 = arith.constant 0 : i32
    %c0_i32_0 = arith.constant 0 : i32
    return %c0_i32, %arg0 : i32, i32
  }
}

</mosaic_0001>

<llo_original>
// kernel: tpu_custom_call.1
$region0: #{tpu_custom_call.1}
  #allocation0 [shape = 'u32[]', space=smem, size = 0x4, offset = 0x4, fixed_abs, tag = 'smem constant byte address 0x4 - core index']
  #allocation1 [shape = 'u32[72,128]{1,0:T(1,128)}', space=vmem, size = 0x9000, scoped, tag = 'internal scratch']
  %s0 = inlined_call_operand.vmem [shape: f32[8,4,128], index: 0, kind: input, shape index: {}]
  %s1 = inlined_call_operand.vmem [shape: f32[3,128], index: 1, kind: input, shape index: {}]
  %s2 = inlined_call_operand.vmem [shape: f32[32,4], index: 2, kind: input, shape index: {}]
  %s3 = inlined_call_operand.vmem [shape: f32[32,3], index: 3, kind: input, shape index: {}]
  %s4 = inlined_call_operand.vmem [shape: f32[32,1], index: 4, kind: input, shape index: {}]
  %s5 = inlined_call_operand.vmem [shape: f32[32,32], index: 5, kind: input, shape index: {}]
  %s6 = inlined_call_operand.vmem [shape: f32[32,1], index: 6, kind: input, shape index: {}]
  %s7 = inlined_call_operand.hbm [shape: f32[32,128], index: 7, kind: output, shape index: {}]
  %s8 = sld [smem:[#allocation0]]
  $region38: #{tpu_custom_call.1} parent=0
    _
  %s10 = ssub.s32 1, %s8
  %s11 = scalar_select 0, %s10, %s8
  $region1: #{tpu_custom_call.1} parent=0
    #allocation2 [shape = 'u8[16384]{0}', space=vmem, size = 0x4000, scoped, tag = 'output window, operand 0, single buffered']
    #allocation3 [shape = 's32[1]{0}', space=sflag, size = 0x4, scoped, tag = 'scoped memory for tpu_custom_call.1']
    %12 = vsyncpa [#allocation3], 0
    // Predicated region
    $region2: #{tpu_custom_call.1} parent=1 // pred_check
      _
    $region3: #{tpu_custom_call.1} parent=1 // pred_check_branch
      %14 = sbr.rel (0) target = $region5
    $region4: #{tpu_custom_call.1} parent=1 // pred_region
      _
    $region5: #{tpu_custom_call.1} parent=1 // pred_fallthru
      _
    // Predicated region
    $region6: #{tpu_custom_call.1} parent=1 // pred_check
      _
    $region7: #{tpu_custom_call.1} parent=1 // pred_check_branch
      %16 = sbr.rel (0) target = $region9
    $region8: #{tpu_custom_call.1} parent=1 // pred_region
      _
    $region9: #{tpu_custom_call.1} parent=1 // pred_fallthru
      _
    // Predicated region
    $region10: #{tpu_custom_call.1} parent=1 // pred_check
      _
    $region11: #{tpu_custom_call.1} parent=1 // pred_check_branch
      %18 = sbr.rel (0) target = $region13
    $region12: #{tpu_custom_call.1} parent=1 // pred_region
      _
    $region13: #{tpu_custom_call.1} parent=1 // pred_fallthru
      _
    // Predicated region
    $region14: #{tpu_custom_call.1} parent=1 // pred_check
      _
    $region15: #{tpu_custom_call.1} parent=1 // pred_check_branch
      %20 = sbr.rel (0) target = $region17
    $region16: #{tpu_custom_call.1} parent=1 // pred_region
      _
    $region17: #{tpu_custom_call.1} parent=1 // pred_fallthru
      _
    // Predicated region
    $region18: #{tpu_custom_call.1} parent=1 // pred_check
      _
    $region19: #{tpu_custom_call.1} parent=1 // pred_check_branch
      %22 = sbr.rel (0) target = $region21
    $region20: #{tpu_custom_call.1} parent=1 // pred_region
      _
    $region21: #{tpu_custom_call.1} parent=1 // pred_fallthru
      _
    // Predicated region
    $region22: #{tpu_custom_call.1} parent=1 // pred_check
      _
    $region23: #{tpu_custom_call.1} parent=1 // pred_check_branch
      %24 = sbr.rel (0) target = $region25
    $region24: #{tpu_custom_call.1} parent=1 // pred_region
      _
    $region25: #{tpu_custom_call.1} parent=1 // pred_fallthru
      _
    // Predicated region
    $region26: #{tpu_custom_call.1} parent=1 // pred_check
      _
    $region27: #{tpu_custom_call.1} parent=1 // pred_check_branch
      %26 = sbr.rel (0) target = $region29
    $region28: #{tpu_custom_call.1} parent=1 // pred_region
      _
    $region29: #{tpu_custom_call.1} parent=1 // pred_fallthru
      _
    %v27 = vld [vmem:[%s1] sm:$0x7]
    %v28 = vld [vmem:[%s2] sm:$0xff]
    %v29 = vld [vmem:[%s2 + $0x8] sm:$0xff]
    %v30 = vld [vmem:[%s2 + $0x10] sm:$0xff]
    %v31 = vld [vmem:[%s2 + $0x18] sm:$0xff]
    %v32 = vld [vmem:[%s3] sm:$0xff]
    %v33 = vld [vmem:[%s3 + $0x8] sm:$0xff]
    %v34 = vld [vmem:[%s3 + $0x10] sm:$0xff]
    %v35 = vld [vmem:[%s3 + $0x18] sm:$0xff]
    %v36 = vld [vmem:[%s5] sm:$0xff]
    %v37 = vld [vmem:[%s5 + $0x8] sm:$0xff]
    %v38 = vld [vmem:[%s5 + $0x10] sm:$0xff]
    %v39 = vld [vmem:[%s5 + $0x18] sm:$0xff]
    %v40 = vld [vmem:[%s4] sm:$0xff]
    %v41 = vld [vmem:[%s4 + $0x8] sm:$0xff]
    %v42 = vld [vmem:[%s4 + $0x10] sm:$0xff]
    %v43 = vld [vmem:[%s4 + $0x18] sm:$0xff]
    %45 = vset.pattern.permute.xlu0 0
    %46 = vperm.xlu0 %45, %v40
    %v47 = vpop.permute.xlu0 %46
    %50 = vset.pattern.permute.xlu0 0
    %51 = vperm.xlu0 %50, %v41
    %v52 = vpop.permute.xlu0 %51
    %55 = vset.pattern.permute.xlu0 0
    %56 = vperm.xlu0 %55, %v42
    %v57 = vpop.permute.xlu0 %56
    %60 = vset.pattern.permute.xlu0 0
    %61 = vperm.xlu0 %60, %v43
    %v62 = vpop.permute.xlu0 %61
    %vm64 = vcmask 23552
    %v66 = vsel %vm64, %v32, 0
    %v69 = vsel %vm64, %v33, 0
    %v72 = vsel %vm64, %v34, 0
    %v75 = vsel %vm64, %v35, 0
    %vm77 = vcmask 1042432
    %v79 = vsel %vm77, %v27, 0
    %81 = vmatpush.msra.mxu0 0.0
    %82 = vmatpush.msra.mxu0 0.0
    %83 = vmatpush.msra.mxu0 0.0
    %84 = vmatpush.msra.mxu0 0.0
    %85 = vmatpush.msra.mxu0 0.0
    %86 = vmatpush.msra.mxu0 0.0
    %87 = vmatpush.msra.mxu0 0.0
    %88 = vmatpush.msra.mxu0 0.0
    %89 = vmatpush.msra.mxu0 0.0
    %90 = vmatpush.msra.mxu0 0.0
    %91 = vmatpush.msra.mxu0 0.0
    %92 = vmatpush.msra.mxu0 0.0
    %93 = vmatpush.msra.mxu0 0.0
    %94 = vmatpush.msra.mxu0 0.0
    %95 = vmatpush.msra.mxu0 0.0
    %96 = vmatpush.msra.mxu0 %v79
    %97 = vmatmul.f32.gmra.mxu0 %v66
    %v98 = vpop.f32.mrf.mxu0
    %v99 = vadd.f32 %v47, %v98
    %100 = vmatmul.f32.gmra.mxu0 %v69
    %v101 = vpop.f32.mrf.mxu0
    %v102 = vadd.f32 %v52, %v101
    %103 = vmatmul.f32.gmra.mxu0 %v72
    %v104 = vpop.f32.mrf.mxu0
    %v105 = vadd.f32 %v57, %v104
    %106 = vmatmul.f32.gmra.mxu0 %v75
    %v107 = vpop.f32.mrf.mxu0
    %v108 = vadd.f32 %v62, %v107
    %109 = vdwg.mxu0
    %v110 = vld [vmem:[%s6] sm:$0xff]
    %v111 = vld [vmem:[%s6 + $0x8] sm:$0xff]
    %v112 = vld [vmem:[%s6 + $0x10] sm:$0xff]
    %v113 = vld [vmem:[%s6 + $0x18] sm:$0xff]
    %115 = vset.pattern.permute.xlu0 0
    %116 = vperm.xlu0 %115, %v110
    %v117 = vpop.permute.xlu0 %116
    %120 = vset.pattern.permute.xlu0 0
    %121 = vperm.xlu0 %120, %v111
    %v122 = vpop.permute.xlu0 %121
    %125 = vset.pattern.permute.xlu0 0
    %126 = vperm.xlu0 %125, %v112
    %v127 = vpop.permute.xlu0 %126
    %130 = vset.pattern.permute.xlu0 0
    %131 = vperm.xlu0 %130, %v113
    %v132 = vpop.permute.xlu0 %131
    %v134 = vld [vmem:[%s0] sm:$0xf]
    %vm135 = vcmask 31744
    %v137 = vsel %vm135, %v28, 0
    %v140 = vsel %vm135, %v29, 0
    %v143 = vsel %vm135, %v30, 0
    %v146 = vsel %vm135, %v31, 0
    %vm148 = vcmask 1043456
    %v150 = vsel %vm148, %v134, 0
    %152 = vmatpush.msra.mxu0 0.0
    %153 = vmatpush.msra.mxu0 0.0
    %154 = vmatpush.msra.mxu0 0.0
    %155 = vmatpush.msra.mxu0 0.0
    %156 = vmatpush.msra.mxu0 0.0
    %157 = vmatpush.msra.mxu0 0.0
    %158 = vmatpush.msra.mxu0 0.0
    %159 = vmatpush.msra.mxu0 0.0
    %160 = vmatpush.msra.mxu0 0.0
    %161 = vmatpush.msra.mxu0 0.0
    %162 = vmatpush.msra.mxu0 0.0
    %163 = vmatpush.msra.mxu0 0.0
    %164 = vmatpush.msra.mxu0 0.0
    %165 = vmatpush.msra.mxu0 0.0
    %166 = vmatpush.msra.mxu0 0.0
    %167 = vmatpush.msra.mxu0 %v150
    %168 = vmatmul.f32.gmra.mxu0 %v137
    %v169 = vpop.f32.mrf.mxu0
    %v170 = vadd.f32 %v99, %v169
    %171 = vmatmul.f32.gmra.mxu0 %v140
    %v172 = vpop.f32.mrf.mxu0
    %v173 = vadd.f32 %v102, %v172
    %174 = vmatmul.f32.gmra.mxu0 %v143
    %v175 = vpop.f32.mrf.mxu0
    %v176 = vadd.f32 %v105, %v175
    %177 = vmatmul.f32.gmra.mxu0 %v146
    %v178 = vpop.f32.mrf.mxu0
    %v179 = vadd.f32 %v108, %v178
    %180 = vdwg.mxu0
    %v181 = vmax.f32 %v170, 0.0
    %v182 = vmax.f32 %v173, 0.0
    %v183 = vmax.f32 %v176, 0.0
    %v184 = vmax.f32 %v179, 0.0
    %vm185 = vcmask 261120
    %v187 = vsel %vm185, %v36, 0
    %v190 = vsel %vm185, %v37, 0
    %v193 = vsel %vm185, %v38, 0
    %v196 = vsel %vm185, %v39, 0
    %198 = vmatpush.msra.mxu0 0.0
    %199 = vmatpush.msra.mxu0 0.0
    %200 = vmatpush.msra.mxu0 0.0
    %201 = vmatpush.msra.mxu0 0.0
    %202 = vmatpush.msra.mxu0 0.0
    %203 = vmatpush.msra.mxu0 0.0
    %204 = vmatpush.msra.mxu0 0.0
    %205 = vmatpush.msra.mxu0 0.0
    %206 = vmatpush.msra.mxu0 0.0
    %207 = vmatpush.msra.mxu0 0.0
    %208 = vmatpush.msra.mxu0 0.0
    %209 = vmatpush.msra.mxu0 0.0
    %210 = vmatpush.msra.mxu0 %v184
    %211 = vmatpush.msra.mxu0 %v183
    %212 = vmatpush.msra.mxu0 %v182
    %213 = vmatpush.msra.mxu0 %v181
    %214 = vmatmul.f32.gmra.mxu0 %v187
    %v215 = vpop.f32.mrf.mxu0
    %v216 = vadd.f32 %v117, %v215
    %217 = vmatmul.f32.gmra.mxu0 %v190
    %v218 = vpop.f32.mrf.mxu0
    %v219 = vadd.f32 %v122, %v218
    %220 = vmatmul.f32.gmra.mxu0 %v193
    %v221 = vpop.f32.mrf.mxu0
    %v222 = vadd.f32 %v127, %v221
    %223 = vmatmul.f32.gmra.mxu0 %v196
    %v224 = vpop.f32.mrf.mxu0
    %v225 = vadd.f32 %v132, %v224
    %226 = vdwg.mxu0
    %v227 = vmax.f32 %v216, 0.0
    %v228 = vmax.f32 %v219, 0.0
    %v229 = vmax.f32 %v222, 0.0
    %v230 = vmax.f32 %v225, 0.0
    %s231 = scalar_lea.vmem %s0, 4
    %v232 = vld [vmem:[%s231] sm:$0xf]
    %v234 = vsel %vm148, %v232, 0
    %236 = vmatpush.msra.mxu0 0.0
    %237 = vmatpush.msra.mxu0 0.0
    %238 = vmatpush.msra.mxu0 0.0
    %239 = vmatpush.msra.mxu0 0.0
    %240 = vmatpush.msra.mxu0 0.0
    %241 = vmatpush.msra.mxu0 0.0
    %242 = vmatpush.msra.mxu0 0.0
    %243 = vmatpush.msra.mxu0 0.0
    %244 = vmatpush.msra.mxu0 0.0
    %245 = vmatpush.msra.mxu0 0.0
    %246 = vmatpush.msra.mxu0 0.0
    %247 = vmatpush.msra.mxu0 0.0
    %248 = vmatpush.msra.mxu0 0.0
    %249 = vmatpush.msra.mxu0 0.0
    %250 = vmatpush.msra.mxu0 0.0
    %251 = vmatpush.msra.mxu0 %v234
    %252 = vmatmul.f32.gmra.mxu0 %v137
    %v253 = vpop.f32.mrf.mxu0
    %v254 = vadd.f32 %v99, %v253
    %255 = vmatmul.f32.gmra.mxu0 %v140
    %v256 = vpop.f32.mrf.mxu0
    %v257 = vadd.f32 %v102, %v256
    %258 = vmatmul.f32.gmra.mxu0 %v143
    %v259 = vpop.f32.mrf.mxu0
    %v260 = vadd.f32 %v105, %v259
    %261 = vmatmul.f32.gmra.mxu0 %v146
    %v262 = vpop.f32.mrf.mxu0
    %v263 = vadd.f32 %v108, %v262
    %264 = vdwg.mxu0
    %v265 = vmax.f32 %v254, 0.0
    %v266 = vmax.f32 %v257, 0.0
    %v267 = vmax.f32 %v260, 0.0
    %v268 = vmax.f32 %v263, 0.0
    %269 = vmatpush.msra.mxu0 0.0
    %270 = vmatpush.msra.mxu0 0.0
    %271 = vmatpush.msra.mxu0 0.0
    %272 = vmatpush.msra.mxu0 0.0
    %273 = vmatpush.msra.mxu0 0.0
    %274 = vmatpush.msra.mxu0 0.0
    %275 = vmatpush.msra.mxu0 0.0
    %276 = vmatpush.msra.mxu0 0.0
    %277 = vmatpush.msra.mxu0 0.0
    %278 = vmatpush.msra.mxu0 0.0
    %279 = vmatpush.msra.mxu0 0.0
    %280 = vmatpush.msra.mxu0 0.0
    %281 = vmatpush.msra.mxu0 %v268
    %282 = vmatpush.msra.mxu0 %v267
    %283 = vmatpush.msra.mxu0 %v266
    %284 = vmatpush.msra.mxu0 %v265
    %285 = vmatmul.f32.gmra.mxu0 %v187
    %v286 = vpop.f32.mrf.mxu0
    %v287 = vadd.f32 %v117, %v286
    %288 = vmatmul.f32.gmra.mxu0 %v190
    %v289 = vpop.f32.mrf.mxu0
    %v290 = vadd.f32 %v122, %v289
    %291 = vmatmul.f32.gmra.mxu0 %v193
    %v292 = vpop.f32.mrf.mxu0
    %v293 = vadd.f32 %v127, %v292
    %294 = vmatmul.f32.gmra.mxu0 %v196
    %v295 = vpop.f32.mrf.mxu0
    %v296 = vadd.f32 %v132, %v295
    %297 = vdwg.mxu0
    %v298 = vmax.f32 %v287, 0.0
    %v299 = vmax.f32 %v290, 0.0
    %v300 = vmax.f32 %v293, 0.0
    %v301 = vmax.f32 %v296, 0.0
    %v302 = vmax.f32 %v227, %v298
    %v303 = vmax.f32 %v228, %v299
    %v304 = vmax.f32 %v229, %v300
    %v305 = vmax.f32 %v230, %v301
    %s306 = scalar_lea.vmem %s0, 8
    %v307 = vld [vmem:[%s306] sm:$0xf]
    %v309 = vsel %vm148, %v307, 0
    %311 = vmatpush.msra.mxu0 0.0
    %312 = vmatpush.msra.mxu0 0.0
    %313 = vmatpush.msra.mxu0 0.0
    %314 = vmatpush.msra.mxu0 0.0
    %315 = vmatpush.msra.mxu0 0.0
    %316 = vmatpush.msra.mxu0 0.0
    %317 = vmatpush.msra.mxu0 0.0
    %318 = vmatpush.msra.mxu0 0.0
    %319 = vmatpush.msra.mxu0 0.0
    %320 = vmatpush.msra.mxu0 0.0
    %321 = vmatpush.msra.mxu0 0.0
    %322 = vmatpush.msra.mxu0 0.0
    %323 = vmatpush.msra.mxu0 0.0
    %324 = vmatpush.msra.mxu0 0.0
    %325 = vmatpush.msra.mxu0 0.0
    %326 = vmatpush.msra.mxu0 %v309
    %327 = vmatmul.f32.gmra.mxu0 %v137
    %v328 = vpop.f32.mrf.mxu0
    %v329 = vadd.f32 %v99, %v328
    %330 = vmatmul.f32.gmra.mxu0 %v140
    %v331 = vpop.f32.mrf.mxu0
    %v332 = vadd.f32 %v102, %v331
    %333 = vmatmul.f32.gmra.mxu0 %v143
    %v334 = vpop.f32.mrf.mxu0
    %v335 = vadd.f32 %v105, %v334
    %336 = vmatmul.f32.gmra.mxu0 %v146
    %v337 = vpop.f32.mrf.mxu0
    %v338 = vadd.f32 %v108, %v337
    %339 = vdwg.mxu0
    %v340 = vmax.f32 %v329, 0.0
    %v341 = vmax.f32 %v332, 0.0
    %v342 = vmax.f32 %v335, 0.0
    %v343 = vmax.f32 %v338, 0.0
    %344 = vmatpush.msra.mxu0 0.0
    %345 = vmatpush.msra.mxu0 0.0
    %346 = vmatpush.msra.mxu0 0.0
    %347 = vmatpush.msra.mxu0 0.0
    %348 = vmatpush.msra.mxu0 0.0
    %349 = vmatpush.msra.mxu0 0.0
    %350 = vmatpush.msra.mxu0 0.0
    %351 = vmatpush.msra.mxu0 0.0
    %352 = vmatpush.msra.mxu0 0.0
    %353 = vmatpush.msra.mxu0 0.0
    %354 = vmatpush.msra.mxu0 0.0
    %355 = vmatpush.msra.mxu0 0.0
    %356 = vmatpush.msra.mxu0 %v343
    %357 = vmatpush.msra.mxu0 %v342
    %358 = vmatpush.msra.mxu0 %v341
    %359 = vmatpush.msra.mxu0 %v340
    %360 = vmatmul.f32.gmra.mxu0 %v187
    %v361 = vpop.f32.mrf.mxu0
    %v362 = vadd.f32 %v117, %v361
    %363 = vmatmul.f32.gmra.mxu0 %v190
    %v364 = vpop.f32.mrf.mxu0
    %v365 = vadd.f32 %v122, %v364
    %366 = vmatmul.f32.gmra.mxu0 %v193
    %v367 = vpop.f32.mrf.mxu0
    %v368 = vadd.f32 %v127, %v367
    %369 = vmatmul.f32.gmra.mxu0 %v196
    %v370 = vpop.f32.mrf.mxu0
    %v371 = vadd.f32 %v132, %v370
    %372 = vdwg.mxu0
    %v373 = vmax.f32 %v362, 0.0
    %v374 = vmax.f32 %v365, 0.0
    %v375 = vmax.f32 %v368, 0.0
    %v376 = vmax.f32 %v371, 0.0
    %v377 = vmax.f32 %v302, %v373
    %v378 = vmax.f32 %v303, %v374
    %v379 = vmax.f32 %v304, %v375
    %v380 = vmax.f32 %v305, %v376
    %s381 = scalar_lea.vmem %s0, 12
    %v382 = vld [vmem:[%s381] sm:$0xf]
    %v384 = vsel %vm148, %v382, 0
    %386 = vmatpush.msra.mxu0 0.0
    %387 = vmatpush.msra.mxu0 0.0
    %388 = vmatpush.msra.mxu0 0.0
    %389 = vmatpush.msra.mxu0 0.0
    %390 = vmatpush.msra.mxu0 0.0
    %391 = vmatpush.msra.mxu0 0.0
    %392 = vmatpush.msra.mxu0 0.0
    %393 = vmatpush.msra.mxu0 0.0
    %394 = vmatpush.msra.mxu0 0.0
    %395 = vmatpush.msra.mxu0 0.0
    %396 = vmatpush.msra.mxu0 0.0
    %397 = vmatpush.msra.mxu0 0.0
    %398 = vmatpush.msra.mxu0 0.0
    %399 = vmatpush.msra.mxu0 0.0
    %400 = vmatpush.msra.mxu0 0.0
    %401 = vmatpush.msra.mxu0 %v384
    %402 = vmatmul.f32.gmra.mxu0 %v137
    %v403 = vpop.f32.mrf.mxu0
    %v404 = vadd.f32 %v99, %v403
    %405 = vmatmul.f32.gmra.mxu0 %v140
    %v406 = vpop.f32.mrf.mxu0
    %v407 = vadd.f32 %v102, %v406
    %408 = vmatmul.f32.gmra.mxu0 %v143
    %v409 = vpop.f32.mrf.mxu0
    %v410 = vadd.f32 %v105, %v409
    %411 = vmatmul.f32.gmra.mxu0 %v146
    %v412 = vpop.f32.mrf.mxu0
    %v413 = vadd.f32 %v108, %v412
    %414 = vdwg.mxu0
    %v415 = vmax.f32 %v404, 0.0
    %v416 = vmax.f32 %v407, 0.0
    %v417 = vmax.f32 %v410, 0.0
    %v418 = vmax.f32 %v413, 0.0
    %419 = vmatpush.msra.mxu0 0.0
    %420 = vmatpush.msra.mxu0 0.0
    %421 = vmatpush.msra.mxu0 0.0
    %422 = vmatpush.msra.mxu0 0.0
    %423 = vmatpush.msra.mxu0 0.0
    %424 = vmatpush.msra.mxu0 0.0
    %425 = vmatpush.msra.mxu0 0.0
    %426 = vmatpush.msra.mxu0 0.0
    %427 = vmatpush.msra.mxu0 0.0
    %428 = vmatpush.msra.mxu0 0.0
    %429 = vmatpush.msra.mxu0 0.0
    %430 = vmatpush.msra.mxu0 0.0
    %431 = vmatpush.msra.mxu0 %v418
    %432 = vmatpush.msra.mxu0 %v417
    %433 = vmatpush.msra.mxu0 %v416
    %434 = vmatpush.msra.mxu0 %v415
    %435 = vmatmul.f32.gmra.mxu0 %v187
    %v436 = vpop.f32.mrf.mxu0
    %v437 = vadd.f32 %v117, %v436
    %438 = vmatmul.f32.gmra.mxu0 %v190
    %v439 = vpop.f32.mrf.mxu0
    %v440 = vadd.f32 %v122, %v439
    %441 = vmatmul.f32.gmra.mxu0 %v193
    %v442 = vpop.f32.mrf.mxu0
    %v443 = vadd.f32 %v127, %v442
    %444 = vmatmul.f32.gmra.mxu0 %v196
    %v445 = vpop.f32.mrf.mxu0
    %v446 = vadd.f32 %v132, %v445
    %447 = vdwg.mxu0
    %v448 = vmax.f32 %v437, 0.0
    %v449 = vmax.f32 %v440, 0.0
    %v450 = vmax.f32 %v443, 0.0
    %v451 = vmax.f32 %v446, 0.0
    %v452 = vmax.f32 %v377, %v448
    %v453 = vmax.f32 %v378, %v449
    %v454 = vmax.f32 %v379, %v450
    %v455 = vmax.f32 %v380, %v451
    %s456 = scalar_lea.vmem %s0, 16
    %v457 = vld [vmem:[%s456] sm:$0xf]
    %v459 = vsel %vm148, %v457, 0
    %461 = vmatpush.msra.mxu0 0.0
    %462 = vmatpush.msra.mxu0 0.0
    %463 = vmatpush.msra.mxu0 0.0
    %464 = vmatpush.msra.mxu0 0.0
    %465 = vmatpush.msra.mxu0 0.0
    %466 = vmatpush.msra.mxu0 0.0
    %467 = vmatpush.msra.mxu0 0.0
    %468 = vmatpush.msra.mxu0 0.0
    %469 = vmatpush.msra.mxu0 0.0
    %470 = vmatpush.msra.mxu0 0.0
    %471 = vmatpush.msra.mxu0 0.0
    %472 = vmatpush.msra.mxu0 0.0
    %473 = vmatpush.msra.mxu0 0.0
    %474 = vmatpush.msra.mxu0 0.0
    %475 = vmatpush.msra.mxu0 0.0
    %476 = vmatpush.msra.mxu0 %v459
    %477 = vmatmul.f32.gmra.mxu0 %v137
    %v478 = vpop.f32.mrf.mxu0
    %v479 = vadd.f32 %v99, %v478
    %480 = vmatmul.f32.gmra.mxu0 %v140
    %v481 = vpop.f32.mrf.mxu0
    %v482 = vadd.f32 %v102, %v481
    %483 = vmatmul.f32.gmra.mxu0 %v143
    %v484 = vpop.f32.mrf.mxu0
    %v485 = vadd.f32 %v105, %v484
    %486 = vmatmul.f32.gmra.mxu0 %v146
    %v487 = vpop.f32.mrf.mxu0
    %v488 = vadd.f32 %v108, %v487
    %489 = vdwg.mxu0
    %v490 = vmax.f32 %v479, 0.0
    %v491 = vmax.f32 %v482, 0.0
    %v492 = vmax.f32 %v485, 0.0
    %v493 = vmax.f32 %v488, 0.0
    %494 = vmatpush.msra.mxu0 0.0
    %495 = vmatpush.msra.mxu0 0.0
    %496 = vmatpush.msra.mxu0 0.0
    %497 = vmatpush.msra.mxu0 0.0
    %498 = vmatpush.msra.mxu0 0.0
    %499 = vmatpush.msra.mxu0 0.0
    %500 = vmatpush.msra.mxu0 0.0
    %501 = vmatpush.msra.mxu0 0.0
    %502 = vmatpush.msra.mxu0 0.0
    %503 = vmatpush.msra.mxu0 0.0
    %504 = vmatpush.msra.mxu0 0.0
    %505 = vmatpush.msra.mxu0 0.0
    %506 = vmatpush.msra.mxu0 %v493
    %507 = vmatpush.msra.mxu0 %v492
    %508 = vmatpush.msra.mxu0 %v491
    %509 = vmatpush.msra.mxu0 %v490
    %510 = vmatmul.f32.gmra.mxu0 %v187
    %v511 = vpop.f32.mrf.mxu0
    %v512 = vadd.f32 %v117, %v511
    %513 = vmatmul.f32.gmra.mxu0 %v190
    %v514 = vpop.f32.mrf.mxu0
    %v515 = vadd.f32 %v122, %v514
    %516 = vmatmul.f32.gmra.mxu0 %v193
    %v517 = vpop.f32.mrf.mxu0
    %v518 = vadd.f32 %v127, %v517
    %519 = vmatmul.f32.gmra.mxu0 %v196
    %v520 = vpop.f32.mrf.mxu0
    %v521 = vadd.f32 %v132, %v520
    %522 = vdwg.mxu0
    %v523 = vmax.f32 %v512, 0.0
    %v524 = vmax.f32 %v515, 0.0
    %v525 = vmax.f32 %v518, 0.0
    %v526 = vmax.f32 %v521, 0.0
    %v527 = vmax.f32 %v452, %v523
    %v528 = vmax.f32 %v453, %v524
    %v529 = vmax.f32 %v454, %v525
    %v530 = vmax.f32 %v455, %v526
    %s531 = scalar_lea.vmem %s0, 20
    %v532 = vld [vmem:[%s531] sm:$0xf]
    %v534 = vsel %vm148, %v532, 0
    %536 = vmatpush.msra.mxu0 0.0
    %537 = vmatpush.msra.mxu0 0.0
    %538 = vmatpush.msra.mxu0 0.0
    %539 = vmatpush.msra.mxu0 0.0
    %540 = vmatpush.msra.mxu0 0.0
    %541 = vmatpush.msra.mxu0 0.0
    %542 = vmatpush.msra.mxu0 0.0
    %543 = vmatpush.msra.mxu0 0.0
    %544 = vmatpush.msra.mxu0 0.0
    %545 = vmatpush.msra.mxu0 0.0
    %546 = vmatpush.msra.mxu0 0.0
    %547 = vmatpush.msra.mxu0 0.0
    %548 = vmatpush.msra.mxu0 0.0
    %549 = vmatpush.msra.mxu0 0.0
    %550 = vmatpush.msra.mxu0 0.0
    %551 = vmatpush.msra.mxu0 %v534
    %552 = vmatmul.f32.gmra.mxu0 %v137
    %v553 = vpop.f32.mrf.mxu0
    %v554 = vadd.f32 %v99, %v553
    %555 = vmatmul.f32.gmra.mxu0 %v140
    %v556 = vpop.f32.mrf.mxu0
    %v557 = vadd.f32 %v102, %v556
    %558 = vmatmul.f32.gmra.mxu0 %v143
    %v559 = vpop.f32.mrf.mxu0
    %v560 = vadd.f32 %v105, %v559
    %561 = vmatmul.f32.gmra.mxu0 %v146
    %v562 = vpop.f32.mrf.mxu0
    %v563 = vadd.f32 %v108, %v562
    %564 = vdwg.mxu0
    %v565 = vmax.f32 %v554, 0.0
    %v566 = vmax.f32 %v557, 0.0
    %v567 = vmax.f32 %v560, 0.0
    %v568 = vmax.f32 %v563, 0.0
    %569 = vmatpush.msra.mxu0 0.0
    %570 = vmatpush.msra.mxu0 0.0
    %571 = vmatpush.msra.mxu0 0.0
    %572 = vmatpush.msra.mxu0 0.0
    %573 = vmatpush.msra.mxu0 0.0
    %574 = vmatpush.msra.mxu0 0.0
    %575 = vmatpush.msra.mxu0 0.0
    %576 = vmatpush.msra.mxu0 0.0
    %577 = vmatpush.msra.mxu0 0.0
    %578 = vmatpush.msra.mxu0 0.0
    %579 = vmatpush.msra.mxu0 0.0
    %580 = vmatpush.msra.mxu0 0.0
    %581 = vmatpush.msra.mxu0 %v568
    %582 = vmatpush.msra.mxu0 %v567
    %583 = vmatpush.msra.mxu0 %v566
    %584 = vmatpush.msra.mxu0 %v565
    %585 = vmatmul.f32.gmra.mxu0 %v187
    %v586 = vpop.f32.mrf.mxu0
    %v587 = vadd.f32 %v117, %v586
    %588 = vmatmul.f32.gmra.mxu0 %v190
    %v589 = vpop.f32.mrf.mxu0
    %v590 = vadd.f32 %v122, %v589
    %591 = vmatmul.f32.gmra.mxu0 %v193
    %v592 = vpop.f32.mrf.mxu0
    %v593 = vadd.f32 %v127, %v592
    %594 = vmatmul.f32.gmra.mxu0 %v196
    %v595 = vpop.f32.mrf.mxu0
    %v596 = vadd.f32 %v132, %v595
    %597 = vdwg.mxu0
    %v598 = vmax.f32 %v587, 0.0
    %v599 = vmax.f32 %v590, 0.0
    %v600 = vmax.f32 %v593, 0.0
    %v601 = vmax.f32 %v596, 0.0
    %v602 = vmax.f32 %v527, %v598
    %v603 = vmax.f32 %v528, %v599
    %v604 = vmax.f32 %v529, %v600
    %v605 = vmax.f32 %v530, %v601
    %s606 = scalar_lea.vmem %s0, 24
    %v607 = vld [vmem:[%s606] sm:$0xf]
    %v609 = vsel %vm148, %v607, 0
    %611 = vmatpush.msra.mxu0 0.0
    %612 = vmatpush.msra.mxu0 0.0
    %613 = vmatpush.msra.mxu0 0.0
    %614 = vmatpush.msra.mxu0 0.0
    %615 = vmatpush.msra.mxu0 0.0
    %616 = vmatpush.msra.mxu0 0.0
    %617 = vmatpush.msra.mxu0 0.0
    %618 = vmatpush.msra.mxu0 0.0
    %619 = vmatpush.msra.mxu0 0.0
    %620 = vmatpush.msra.mxu0 0.0
    %621 = vmatpush.msra.mxu0 0.0
    %622 = vmatpush.msra.mxu0 0.0
    %623 = vmatpush.msra.mxu0 0.0
    %624 = vmatpush.msra.mxu0 0.0
    %625 = vmatpush.msra.mxu0 0.0
    %626 = vmatpush.msra.mxu0 %v609
    %627 = vmatmul.f32.gmra.mxu0 %v137
    %v628 = vpop.f32.mrf.mxu0
    %v629 = vadd.f32 %v99, %v628
    %630 = vmatmul.f32.gmra.mxu0 %v140
    %v631 = vpop.f32.mrf.mxu0
    %v632 = vadd.f32 %v102, %v631
    %633 = vmatmul.f32.gmra.mxu0 %v143
    %v634 = vpop.f32.mrf.mxu0
    %v635 = vadd.f32 %v105, %v634
    %636 = vmatmul.f32.gmra.mxu0 %v146
    %v637 = vpop.f32.mrf.mxu0
    %v638 = vadd.f32 %v108, %v637
    %639 = vdwg.mxu0
    %v640 = vmax.f32 %v629, 0.0
    %v641 = vmax.f32 %v632, 0.0
    %v642 = vmax.f32 %v635, 0.0
    %v643 = vmax.f32 %v638, 0.0
    %644 = vmatpush.msra.mxu0 0.0
    %645 = vmatpush.msra.mxu0 0.0
    %646 = vmatpush.msra.mxu0 0.0
    %647 = vmatpush.msra.mxu0 0.0
    %648 = vmatpush.msra.mxu0 0.0
    %649 = vmatpush.msra.mxu0 0.0
    %650 = vmatpush.msra.mxu0 0.0
    %651 = vmatpush.msra.mxu0 0.0
    %652 = vmatpush.msra.mxu0 0.0
    %653 = vmatpush.msra.mxu0 0.0
    %654 = vmatpush.msra.mxu0 0.0
    %655 = vmatpush.msra.mxu0 0.0
    %656 = vmatpush.msra.mxu0 %v643
    %657 = vmatpush.msra.mxu0 %v642
    %658 = vmatpush.msra.mxu0 %v641
    %659 = vmatpush.msra.mxu0 %v640
    %660 = vmatmul.f32.gmra.mxu0 %v187
    %v661 = vpop.f32.mrf.mxu0
    %v662 = vadd.f32 %v117, %v661
    %663 = vmatmul.f32.gmra.mxu0 %v190
    %v664 = vpop.f32.mrf.mxu0
    %v665 = vadd.f32 %v122, %v664
    %666 = vmatmul.f32.gmra.mxu0 %v193
    %v667 = vpop.f32.mrf.mxu0
    %v668 = vadd.f32 %v127, %v667
    %669 = vmatmul.f32.gmra.mxu0 %v196
    %v670 = vpop.f32.mrf.mxu0
    %v671 = vadd.f32 %v132, %v670
    %672 = vdwg.mxu0
    %v673 = vmax.f32 %v662, 0.0
    %v674 = vmax.f32 %v665, 0.0
    %v675 = vmax.f32 %v668, 0.0
    %v676 = vmax.f32 %v671, 0.0
    %v677 = vmax.f32 %v602, %v673
    %v678 = vmax.f32 %v603, %v674
    %v679 = vmax.f32 %v604, %v675
    %v680 = vmax.f32 %v605, %v676
    %s681 = scalar_lea.vmem %s0, 28
    %v682 = vld [vmem:[%s681] sm:$0xf]
    %v684 = vsel %vm148, %v682, 0
    %686 = vmatpush.msra.mxu0 0.0
    %687 = vmatpush.msra.mxu0 0.0
    %688 = vmatpush.msra.mxu0 0.0
    %689 = vmatpush.msra.mxu0 0.0
    %690 = vmatpush.msra.mxu0 0.0
    %691 = vmatpush.msra.mxu0 0.0
    %692 = vmatpush.msra.mxu0 0.0
    %693 = vmatpush.msra.mxu0 0.0
    %694 = vmatpush.msra.mxu0 0.0
    %695 = vmatpush.msra.mxu0 0.0
    %696 = vmatpush.msra.mxu0 0.0
    %697 = vmatpush.msra.mxu0 0.0
    %698 = vmatpush.msra.mxu0 0.0
    %699 = vmatpush.msra.mxu0 0.0
    %700 = vmatpush.msra.mxu0 0.0
    %701 = vmatpush.msra.mxu0 %v684
    %702 = vmatmul.f32.gmra.mxu0 %v137
    %v703 = vpop.f32.mrf.mxu0
    %v704 = vadd.f32 %v99, %v703
    %705 = vmatmul.f32.gmra.mxu0 %v140
    %v706 = vpop.f32.mrf.mxu0
    %v707 = vadd.f32 %v102, %v706
    %708 = vmatmul.f32.gmra.mxu0 %v143
    %v709 = vpop.f32.mrf.mxu0
    %v710 = vadd.f32 %v105, %v709
    %711 = vmatmul.f32.gmra.mxu0 %v146
    %v712 = vpop.f32.mrf.mxu0
    %v713 = vadd.f32 %v108, %v712
    %714 = vdwg.mxu0
    %v715 = vmax.f32 %v704, 0.0
    %v716 = vmax.f32 %v707, 0.0
    %v717 = vmax.f32 %v710, 0.0
    %v718 = vmax.f32 %v713, 0.0
    %719 = vmatpush.msra.mxu0 0.0
    %720 = vmatpush.msra.mxu0 0.0
    %721 = vmatpush.msra.mxu0 0.0
    %722 = vmatpush.msra.mxu0 0.0
    %723 = vmatpush.msra.mxu0 0.0
    %724 = vmatpush.msra.mxu0 0.0
    %725 = vmatpush.msra.mxu0 0.0
    %726 = vmatpush.msra.mxu0 0.0
    %727 = vmatpush.msra.mxu0 0.0
    %728 = vmatpush.msra.mxu0 0.0
    %729 = vmatpush.msra.mxu0 0.0
    %730 = vmatpush.msra.mxu0 0.0
    %731 = vmatpush.msra.mxu0 %v718
    %732 = vmatpush.msra.mxu0 %v717
    %733 = vmatpush.msra.mxu0 %v716
    %734 = vmatpush.msra.mxu0 %v715
    %735 = vmatmul.f32.gmra.mxu0 %v187
    %v736 = vpop.f32.mrf.mxu0
    %v737 = vadd.f32 %v117, %v736
    %738 = vmatmul.f32.gmra.mxu0 %v190
    %v739 = vpop.f32.mrf.mxu0
    %v740 = vadd.f32 %v122, %v739
    %741 = vmatmul.f32.gmra.mxu0 %v193
    %v742 = vpop.f32.mrf.mxu0
    %v743 = vadd.f32 %v127, %v742
    %744 = vmatmul.f32.gmra.mxu0 %v196
    %v745 = vpop.f32.mrf.mxu0
    %v746 = vadd.f32 %v132, %v745
    %747 = vdwg.mxu0
    %v748 = vmax.f32 %v737, 0.0
    %v749 = vmax.f32 %v740, 0.0
    %v750 = vmax.f32 %v743, 0.0
    %v751 = vmax.f32 %v746, 0.0
    %v752 = vmax.f32 %v677, %v748
    %v753 = vmax.f32 %v678, %v749
    %v754 = vmax.f32 %v679, %v750
    %v755 = vmax.f32 %v680, %v751
    %756 = vst [vmem:[#allocation2] sm:$0xff] %v752
    %757 = vst [vmem:[#allocation2 + $0x8] sm:$0xff] %v753
    %758 = vst [vmem:[#allocation2 + $0x10] sm:$0xff] %v754
    %759 = vst [vmem:[#allocation2 + $0x18] sm:$0xff] %v755
    // Predicated region
    $region30: #{tpu_custom_call.1} parent=1 // pred_check
      _
    $region31: #{tpu_custom_call.1} parent=1 // pred_check_branch
      %761 = sbr.rel (0) target = $region33
    $region32: #{tpu_custom_call.1} parent=1 // pred_region
      %763 = vsyncadd [#allocation3], 0
      %s764 = sshll.u32 [#allocation2], 4
      %s765 = int_to_ptr.vmem [resolvable:$true] %s764
      %s766 = sshll.u32 %s7, 4
      %s767 = int_to_ptr.hbm [resolvable:$true] %s766
      %772 = dma.vmem_to_hbm [thread:$0]  %s765, 512, %s767, [#allocation3], 128, 128, 8
    $region33: #{tpu_custom_call.1} parent=1 // pred_fallthru
      _
    // Predicated region
    $region34: #{tpu_custom_call.1} parent=1 // pred_check
      _
    $region35: #{tpu_custom_call.1} parent=1 // pred_check_branch
      %774 = sbr.rel (0) target = $region37
    $region36: #{tpu_custom_call.1} parent=1 // pred_region
      %776 = dma.done [#allocation3], 512
    $region37: #{tpu_custom_call.1} parent=1 // pred_fallthru
      _
    %777 = vsyncpa [#allocation3], 1

</llo_original>
